<compile_context>
chip_gen: v6e
topology: v6e:2x2x1
jax: 0.10.0
libtpu: 0.0.40
codegen_flags: <defaults>
</compile_context>

<pallas_src>
import jax
import jax.numpy as jnp
from jax.experimental import pallas as pl
from jax.experimental.pallas import tpu as pltpu


def _round_up(x, m):
    return ((x + m - 1) // m) * m


def _vmem_capacity_bytes():
    """Physical per-TensorCore VMEM; fall back to the smallest (v7x, 64 MiB) if query fails."""
    try:
        return int(pltpu.get_tpu_info().vmem_capacity_bytes)
    except Exception:
        return 64 * 1024 * 1024


def _vmem_estimate(tile_b, F, H_pad):
    """Rough VMEM footprint. Pallas double-buffers every BlockSpec input by default, so the
    resident weights (constant index_map) are counted twice as well."""
    x_bytes = 2 * tile_b * F * 4                # streamed x tiles (f32), double-buffered
    w1_bytes = 2 * F * H_pad * 2                # resident w1 (bf16), counted twice
    vec_bytes = 2 * 2 * 8 * H_pad * 4           # b1 row + w2 rows (sublane-padded), twice
    out_bytes = 2 * 8 * tile_b * 4              # (1, tile_b) out block rounds to 8 sublanes
    scratch = 3 * tile_b * H_pad * 4 + tile_b * F * 2   # h, layer-2 temporaries, x bf16 copy
    return x_bytes + w1_bytes + vec_bytes + out_bytes + scratch


def _uncertainty_kernel(x_ref, w1_ref, b1_ref, w2_ref, b2_ref, o_ref):
    # ----- Layer 1 on the MXU: [tile_b, F] @ [F, H_pad] -> [tile_b, H_pad], f32 accumulate.
    # bf16 operands hit native MXU throughput on v6e/v7x (v5e MXU also takes bf16);
    # all post-matmul math stays f32 on the VPU/EUP (v5e has no bf16 VPU ops).
    x_bf = x_ref[...].astype(jnp.bfloat16)
    h = jnp.dot(x_bf, w1_ref[...], preferred_element_type=jnp.float32)
    h = jnp.maximum(h + b1_ref[...], 0.0)          # bias + ReLU (f32, VPU)
    # Dropout(0.1): identity in eval mode.
    # TODO(synk): training-mode dropout mask (pltpu.prng_*) not implemented.

    # ----- Layer 2: contract H and land the batch on the LANE axis -> [.., tile_b] row.
    # dot_general with the rhs contracted on its last dim (standard trans_b MXU path) keeps
    # the result lane-dense, so the output store is a full unmasked row instead of tile_b
    # lane-masked [tile_b, 1] stores (the biggest measured out_spec lever).
    y = jax.lax.dot_general(
        w2_ref[...], h,                            # [8, H_pad] x [tile_b, H_pad]^T
        dimension_numbers=(((1,), (1,)), ((), ())),
        preferred_element_type=jnp.float32,
    )                                              # -> [8, tile_b] (w2 broadcast to 8 rows)
    y = y[0:1, :] + b2_ref[0, 0]                   # row 0 + SMEM scalar bias -> [1, tile_b]

    # ----- Softplus: log(1 + exp(y)), numerically stable (min() guard prevents exp overflow).
    o_ref[...] = jnp.where(y > 20.0, y, jnp.log1p(jnp.exp(jnp.minimum(y, 20.0))))


def uncertainty_estimator(x, w1, b1, w2, b2, tile_b=None):
    """x: [B, F] (f32 or bf16), w1: [F, H], b1: [H], w2: [H, 1], b2: [1] -> uncertainty [B] f32."""
    B, F = x.shape
    H = w1.shape[1]

    # ---- pad hidden dim to a lane multiple: full vregs in bias/ReLU/layer-2, full MXU N.
    # Zero-padded w1 columns give h==0 after ReLU and w2 pad entries are 0 -> exact result.
    H_pad = _round_up(H, 128)
    w1_p = jnp.pad(w1, ((0, 0), (0, H_pad - H))).astype(jnp.bfloat16)       # resident, bf16
    b1_p = jnp.pad(b1, (0, H_pad - H)).reshape(1, H_pad).astype(jnp.float32)
    w2_row = jnp.pad(w2[:, 0], (0, H_pad - H)).reshape(1, H_pad).astype(jnp.float32)
    w2_p = jnp.broadcast_to(w2_row, (8, H_pad))    # >= 8 sublanes for the layer-2 matmul lhs
    b2_2d = b2.reshape(1, 1).astype(jnp.float32)   # scalar bias -> SMEM

    # ---- generation-aware batch tile: biggest multiple of 128 whose (double-buffered)
    # footprint stays under ~40% of this chip's physical VMEM.
    vmem_cap = _vmem_capacity_bytes()
    if tile_b is None:
        budget = int(0.4 * vmem_cap)
        tile_b = 128
        for cand in (1024, 512, 256, 128):
            if _vmem_estimate(cand, F, H_pad) <= budget:
                tile_b = cand
                break
    tile_b = min(tile_b, _round_up(max(B, 1), 128))    # don't over-pad tiny batches

    b_pad = _round_up(B, tile_b)
    # ---- v7x megacore: a "parallel" batch axis only helps if both TensorCores get grid
    # steps; split the batch in two when a single tile would swallow a non-trivial batch.
    if b_pad // tile_b < 2 and B > 128:
        tile_b = max(128, _round_up((B + 1) // 2, 128))
        b_pad = _round_up(B, tile_b)

    if b_pad != B:   # zero rows give finite softplus values; sliced off below
        x = jnp.pad(x, ((0, b_pad - B), (0, 0)))

    grid = (b_pad // tile_b,)

    vmem_est = _vmem_estimate(tile_b, F, H_pad)
    vmem_limit = int(min(max(2 * vmem_est, 32 * 1024 * 1024), (3 * vmem_cap) // 4))

    cost = pl.CostEstimate(
        flops=2 * b_pad * F * H_pad + 2 * b_pad * H_pad,
        transcendentals=2 * b_pad,                                     # exp + log1p per row
        bytes_accessed=b_pad * F * x.dtype.itemsize + F * H_pad * 2
        + 3 * 8 * H_pad * 4 + b_pad * 4,
    )

    out = pl.pallas_call(
        _uncertainty_kernel,
        out_shape=jax.ShapeDtypeStruct((1, b_pad), jnp.float32),       # lane-dense output row
        grid=grid,
        in_specs=[
            pl.BlockSpec((tile_b, F), lambda i: (i, 0)),               # streamed x tile
            # Resident weights (constant index_map) -> no re-DMA per step, but Pallas still
            # allocates two buffers each; _vmem_estimate accounts for that.
            # (pl.Buffered(1) single-buffering skipped for compile safety.)
            pl.BlockSpec((F, H_pad), lambda i: (0, 0)),                # w1 (bf16) resident
            pl.BlockSpec((1, H_pad), lambda i: (0, 0)),                # b1 row resident
            pl.BlockSpec((8, H_pad), lambda i: (0, 0)),                # w2 rows resident
            pl.BlockSpec(memory_space=pltpu.MemorySpace.SMEM),         # b2 scalar in SMEM
        ],
        out_specs=pl.BlockSpec((1, tile_b), lambda i: (0, i)),         # lane-dense (1,tile_b)
        compiler_params=pltpu.CompilerParams(
            dimension_semantics=("parallel",),   # independent batch tiles -> megacore on v7x
            vmem_limit_bytes=vmem_limit,
        ),
        cost_estimate=cost,
    )(x, w1_p, b1_p, w2_p, b2_2d)

    return out[0, :B]   # drop batch padding, squeeze(-1)


def init_params(key, in_features, hidden_features=None):
    """Deterministic parameter init mimicking PyTorch Linear default (uniform)."""
    if hidden_features is None:
        hidden_features = max(in_features // 2, 8)
    k1, k2, k3, k4 = jax.random.split(key, 4)
    bound1 = 1.0 / (in_features ** 0.5)
    bound2 = 1.0 / (hidden_features ** 0.5)
    # Stored as [in, out] (transposed vs. PyTorch's [out, in]).
    w1 = jax.random.uniform(k1, (in_features, hidden_features), jnp.float32, -bound1, bound1)
    b1 = jax.random.uniform(k2, (hidden_features,), jnp.float32, -bound1, bound1)
    w2 = jax.random.uniform(k3, (hidden_features, 1), jnp.float32, -bound2, bound2)
    b2 = jax.random.uniform(k4, (1,), jnp.float32, -bound2, bound2)
    return w1, b1, w2, b2


if __name__ == "__main__":
    key = jax.random.PRNGKey(0)
    kx, kp = jax.random.split(key)

    batch, in_features = 2, 32
    x = jax.random.normal(kx, (batch, in_features), dtype=jnp.float32)
    w1, b1, w2, b2 = init_params(kp, in_features)

    uncertainty = jax.block_until_ready(uncertainty_estimator(x, w1, b1, w2, b2))

    # Pure-JAX reference using the same bf16 layer-1 matmul as the kernel.
    h_ref = jnp.maximum(
        jnp.dot(x.astype(jnp.bfloat16), w1.astype(jnp.bfloat16),
                preferred_element_type=jnp.float32) + b1, 0.0)
    y_ref = (h_ref @ w2)[:, 0] + b2[0]
    ref = jax.nn.softplus(y_ref)

    assert uncertainty.shape == (batch,)
    assert jnp.allclose(uncertainty, ref, atol=1e-4, rtol=1e-4), (uncertainty, ref)

    # Loose sanity check against the full-f32 reference (bf16 MXU path ~1e-3 rel).
    h32 = jnp.maximum(x @ w1 + b1, 0.0)
    ref32 = jax.nn.softplus((h32 @ w2)[:, 0] + b2[0])
    assert jnp.allclose(uncertainty, ref32, atol=1e-2, rtol=2e-2), (uncertainty, ref32)

    print("KERNEL_OK")
</pallas_src>

<mosaic_0001>
module attributes {stable_mosaic.version = 11 : i64} {
  func.func @_uncertainty_kernel(%arg0: i32, %arg1: memref<128x32xf32, #tpu.memory_space<vmem>>, %arg2: memref<32x128xbf16, #tpu.memory_space<vmem>>, %arg3: memref<1x128xf32, #tpu.memory_space<vmem>>, %arg4: memref<8x128xf32, #tpu.memory_space<vmem>>, %arg5: memref<1x1xf32, #tpu.memory_space<smem>>, %arg6: memref<1x128xf32, #tpu.memory_space<vmem>>) attributes {dimension_semantics = [#tpu.dimension_semantics<parallel>], iteration_bounds = array<i64: 1>, scalar_prefetch = 0 : i64, scratch_operands = 0 : i64, tpu.core_type = #tpu.core_type<tc>, window_params = [{transform_indices = @transform_0, window_bounds = array<i64: 128, 32>}, {pipeline_mode = #tpu.pipeline_mode<synchronous>, transform_indices = @transform_1, window_bounds = array<i64: 32, 128>}, {pipeline_mode = #tpu.pipeline_mode<synchronous>, transform_indices = @transform_2, window_bounds = array<i64: 1, 128>}, {pipeline_mode = #tpu.pipeline_mode<synchronous>, transform_indices = @transform_3, window_bounds = array<i64: 8, 128>}, {transform_indices = @transform_4, window_bounds = array<i64: 1, 1>}, {transform_indices = @transform_5, window_bounds = array<i64: 1, 128>}]} {
    %c0 = arith.constant 0 : index
    %c0_0 = arith.constant 0 : index
    %0 = vector.load %arg1[%c0, %c0_0] : memref<128x32xf32, #tpu.memory_space<vmem>>, vector<128x32xf32>
    %1 = arith.truncf %0 : vector<128x32xf32> to vector<128x32xbf16>
    %c0_1 = arith.constant 0 : index
    %c0_2 = arith.constant 0 : index
    %2 = vector.load %arg2[%c0_1, %c0_2] : memref<32x128xbf16, #tpu.memory_space<vmem>>, vector<32x128xbf16>
    %cst = arith.constant dense<0.000000e+00> : vector<128x128xf32>
    %3 = tpu.matmul %1, %2, %cst {dimension_numbers = #tpu.dot_dimension_numbers<[1], [0], [0], [1], [0, 0, 1, 1], [], []>} : vector<128x32xbf16>, vector<32x128xbf16>, vector<128x128xf32> -> vector<128x128xf32>
    %c0_3 = arith.constant 0 : index
    %c0_4 = arith.constant 0 : index
    %4 = vector.load %arg3[%c0_3, %c0_4] : memref<1x128xf32, #tpu.memory_space<vmem>>, vector<1x128xf32>
    %5 = vector.broadcast %4 : vector<1x128xf32> to vector<128x128xf32>
    %6 = arith.addf %3, %5 : vector<128x128xf32>
    %cst_5 = arith.constant 0.000000e+00 : f32
    %7 = vector.broadcast %cst_5 : f32 to vector<128x128xf32>
    %8 = arith.maximumf %6, %7 : vector<128x128xf32>
    %c0_6 = arith.constant 0 : index
    %c0_7 = arith.constant 0 : index
    %9 = vector.load %arg4[%c0_6, %c0_7] : memref<8x128xf32, #tpu.memory_space<vmem>>, vector<8x128xf32>
    %cst_8 = arith.constant dense<0.000000e+00> : vector<8x128xf32>
    %10 = tpu.matmul %9, %8, %cst_8 {dimension_numbers = #tpu.dot_dimension_numbers<[1], [1], [0], [0], [0, 0, 1, 0], [], []>} : vector<8x128xf32>, vector<128x128xf32>, vector<8x128xf32> -> vector<8x128xf32>
    %11 = vector.extract_strided_slice %10 {offsets = [0, 0], sizes = [1, 128], strides = [1, 1]} : vector<8x128xf32> to vector<1x128xf32>
    %c0_9 = arith.constant 0 : index
    %c0_10 = arith.constant 0 : index
    %12 = memref.load %arg5[%c0_9, %c0_10] : memref<1x1xf32, #tpu.memory_space<smem>>
    %13 = vector.broadcast %12 : f32 to vector<1x128xf32>
    %14 = arith.addf %11, %13 : vector<1x128xf32>
    %cst_11 = arith.constant 2.000000e+01 : f32
    %15 = vector.broadcast %cst_11 : f32 to vector<1x128xf32>
    %16 = arith.cmpf ogt, %14, %15 : vector<1x128xf32>
    %cst_12 = arith.constant 2.000000e+01 : f32
    %17 = vector.broadcast %cst_12 : f32 to vector<1x128xf32>
    %18 = arith.minimumf %14, %17 : vector<1x128xf32>
    %19 = math.exp %18 : vector<1x128xf32>
    %20 = math.log1p %19 : vector<1x128xf32>
    %21 = arith.select %16, %14, %20 : vector<1x128xi1>, vector<1x128xf32>
    %c0_13 = arith.constant 0 : index
    %c0_14 = arith.constant 0 : index
    %22 = vector.load %arg6[%c0_13, %c0_14] : memref<1x128xf32, #tpu.memory_space<vmem>>, vector<1x128xf32>
    tpu.vector_store %arg6[%c0_13, %c0_14], %21 {strides = array<i32>} : memref<1x128xf32, #tpu.memory_space<vmem>>, vector<1x128xf32>,
    return
  }
  func.func @transform_0(%arg0: i32) -> (i32, i32) {
    %c0_i32 = arith.constant 0 : i32
    %c0_i32_0 = arith.constant 0 : i32
    return %arg0, %c0_i32 : i32, i32
  }
  func.func @transform_1(%arg0: i32) -> (i32, i32) {
    %c0_i32 = arith.constant 0 : i32
    %c0_i32_0 = arith.constant 0 : i32
    %c0_i32_1 = arith.constant 0 : i32
    return %c0_i32, %c0_i32_0 : i32, i32
  }
  func.func @transform_2(%arg0: i32) -> (i32, i32) {
    %c0_i32 = arith.constant 0 : i32
    %c0_i32_0 = arith.constant 0 : i32
    %c0_i32_1 = arith.constant 0 : i32
    return %c0_i32, %c0_i32_0 : i32, i32
  }
  func.func @transform_3(%arg0: i32) -> (i32, i32) {
    %c0_i32 = arith.constant 0 : i32
    %c0_i32_0 = arith.constant 0 : i32
    %c0_i32_1 = arith.constant 0 : i32
    return %c0_i32, %c0_i32_0 : i32, i32
  }
  func.func @transform_4(%arg0: i32) -> (i32, i32) {
    %c0_i32 = arith.constant 0 : i32
    %c0_i32_0 = arith.constant 0 : i32
    %c0_i32_1 = arith.constant 0 : i32
    return %c0_i32, %c0_i32_0 : i32, i32
  }
  func.func @transform_5(%arg0: i32) -> (i32, i32) {
    %c0_i32 = arith.constant 0 : i32
    %c0_i32_0 = arith.constant 0 : i32
    return %c0_i32, %arg0 : i32, i32
  }
}

</mosaic_0001>

<llo_original>
// kernel: tpu_custom_call.1
$region0: #{tpu_custom_call.1}
  #allocation0 [shape = 'u32[]', space=smem, size = 0x4, offset = 0x4, fixed_abs, tag = 'smem constant byte address 0x4 - core index']
  #allocation1 [shape = 'u32[144,128]{1,0:T(1,128)}', space=vmem, size = 0x12000, scoped, tag = 'internal scratch']
  #allocation2 [shape = 'f32[1,1]{1,0:T(1,128)S(6)}', space=smem, size = 0x200, scoped, tag = 'scoped memory for tpu_custom_call.1']
  %s0 = inlined_call_operand.vmem [shape: f32[128,32], index: 0, kind: input, shape index: {}]
  %s1 = inlined_call_operand.vmem [shape: bf16[32,128], index: 1, kind: input, shape index: {}]
  %s2 = inlined_call_operand.vmem [shape: f32[1,128], index: 2, kind: input, shape index: {}]
  %s3 = inlined_call_operand.vmem [shape: f32[8,128], index: 3, kind: input, shape index: {}]
  %s4 = inlined_call_operand.<no memory space> [shape: f32[1,1], index: 4, kind: input, shape index: {}]
  %s5 = inlined_call_operand.hbm [shape: f32[1,128], index: 5, kind: output, shape index: {}]
  %s6 = sld [smem:[#allocation0]]
  $region30: #{tpu_custom_call.1} parent=0
    _
  %s8 = ssub.s32 1, %s6
  %s9 = scalar_select 0, %s8, %s6
  %10 = sst [smem:[#allocation2]] %s4
  $region1: #{tpu_custom_call.1} parent=0
    #allocation3 [shape = 'u8[512]{0}', space=vmem, size = 0x400, scoped, tag = 'output window, operand 0, single buffered']
    #allocation4 [shape = 's32[1]{0}', space=sflag, size = 0x4, scoped, tag = 'scoped memory for tpu_custom_call.1']
    %11 = vsyncpa [#allocation4], 0
    // Predicated region
    $region2: #{tpu_custom_call.1} parent=1 // pred_check
      _
    $region3: #{tpu_custom_call.1} parent=1 // pred_check_branch
      %13 = sbr.rel (0) target = $region5
    $region4: #{tpu_custom_call.1} parent=1 // pred_region
      _
    $region5: #{tpu_custom_call.1} parent=1 // pred_fallthru
      _
    // Predicated region
    $region6: #{tpu_custom_call.1} parent=1 // pred_check
      _
    $region7: #{tpu_custom_call.1} parent=1 // pred_check_branch
      %15 = sbr.rel (0) target = $region9
    $region8: #{tpu_custom_call.1} parent=1 // pred_region
      _
    $region9: #{tpu_custom_call.1} parent=1 // pred_fallthru
      _
    // Predicated region
    $region10: #{tpu_custom_call.1} parent=1 // pred_check
      _
    $region11: #{tpu_custom_call.1} parent=1 // pred_check_branch
      %17 = sbr.rel (0) target = $region13
    $region12: #{tpu_custom_call.1} parent=1 // pred_region
      _
    $region13: #{tpu_custom_call.1} parent=1 // pred_fallthru
      _
    // Predicated region
    $region14: #{tpu_custom_call.1} parent=1 // pred_check
      _
    $region15: #{tpu_custom_call.1} parent=1 // pred_check_branch
      %19 = sbr.rel (0) target = $region17
    $region16: #{tpu_custom_call.1} parent=1 // pred_region
      _
    $region17: #{tpu_custom_call.1} parent=1 // pred_fallthru
      _
    // Predicated region
    $region18: #{tpu_custom_call.1} parent=1 // pred_check
      _
    $region19: #{tpu_custom_call.1} parent=1 // pred_check_branch
      %21 = sbr.rel (0) target = $region21
    $region20: #{tpu_custom_call.1} parent=1 // pred_region
      _
    $region21: #{tpu_custom_call.1} parent=1 // pred_fallthru
      _
    %v23 = vld [vmem:[%s0] sm:$0xff]
    %v24 = vld [vmem:[%s0 + $0x8] sm:$0xff]
    %v25 = vld [vmem:[%s0 + $0x10] sm:$0xff]
    %v26 = vld [vmem:[%s0 + $0x18] sm:$0xff]
    %v27 = vld [vmem:[%s0 + $0x20] sm:$0xff]
    %v28 = vld [vmem:[%s0 + $0x28] sm:$0xff]
    %v29 = vld [vmem:[%s0 + $0x30] sm:$0xff]
    %v30 = vld [vmem:[%s0 + $0x38] sm:$0xff]
    %v31 = vld [vmem:[%s0 + $0x40] sm:$0xff]
    %v32 = vld [vmem:[%s0 + $0x48] sm:$0xff]
    %v33 = vld [vmem:[%s0 + $0x50] sm:$0xff]
    %v34 = vld [vmem:[%s0 + $0x58] sm:$0xff]
    %v35 = vld [vmem:[%s0 + $0x60] sm:$0xff]
    %v36 = vld [vmem:[%s0 + $0x68] sm:$0xff]
    %v37 = vld [vmem:[%s0 + $0x70] sm:$0xff]
    %v38 = vld [vmem:[%s0 + $0x78] sm:$0xff]
    %v39 = vpack.c.bf16 %v24, %v23
    %v40 = vpack.c.bf16 %v26, %v25
    %v41 = vpack.c.bf16 %v28, %v27
    %v42 = vpack.c.bf16 %v30, %v29
    %v43 = vpack.c.bf16 %v32, %v31
    %v44 = vpack.c.bf16 %v34, %v33
    %v45 = vpack.c.bf16 %v36, %v35
    %v46 = vpack.c.bf16 %v38, %v37
    %v47 = vld [vmem:[%s1] sm:$0xf]
    %v48 = vld [vmem:[%s1 + $0x4] sm:$0xf]
    %v49 = vld [vmem:[%s1 + $0x8] sm:$0xf]
    %v50 = vld [vmem:[%s1 + $0xc] sm:$0xf]
    %v51 = vld [vmem:[%s2] sm:$0x1]
    %v53 = vlaneseq
    %v54 = vshrl.u32 %v53, 7
    %v55 = vsub.s32 0, %v54
    %v56 = vrot.slane %v51, %v55
    %v62 = vunpack.c.l.b16 %v47
    %v63 = vunpack.c.l.b16 %v48
    %v64 = vunpack.c.l.b16 %v49
    %v65 = vunpack.c.l.b16 %v50
    %v66 = vpack.c.b16 %v63, %v62
    %v67 = vpack.c.b16 %v65, %v64
    %vm70 = vcmask 261120
    %v72 = vsel %vm70, %v39, 0
    %v75 = vsel %vm70, %v40, 0
    %v78 = vsel %vm70, %v41, 0
    %v81 = vsel %vm70, %v42, 0
    %v84 = vsel %vm70, %v43, 0
    %v87 = vsel %vm70, %v44, 0
    %v90 = vsel %vm70, %v45, 0
    %v93 = vsel %vm70, %v46, 0
    %95 = vmatprep.subr.bf16.mxu0 0
    %96 = vmatpush1.bf16.msra.mxu0 0
    %97 = vmatprep.subr.bf16.mxu0 0
    %98 = vmatpush1.bf16.msra.mxu0 0
    %99 = vmatprep.subr.bf16.mxu0 0
    %100 = vmatpush1.bf16.msra.mxu0 0
    %101 = vmatprep.subr.bf16.mxu0 0
    %102 = vmatpush1.bf16.msra.mxu0 0
    %103 = vmatprep.subr.bf16.mxu0 0
    %104 = vmatpush1.bf16.msra.mxu0 0
    %105 = vmatprep.subr.bf16.mxu0 0
    %106 = vmatpush1.bf16.msra.mxu0 0
    %107 = vmatprep.subr.bf16.mxu0 0
    %108 = vmatpush1.bf16.msra.mxu0 %v67
    %109 = vmatprep.subr.bf16.mxu0 0
    %110 = vmatpush1.bf16.msra.mxu0 %v66
    %111 = vmatprep.subr.bf16.mxu0 0
    %112 = vmatpush2.bf16.msra.mxu0 0
    %113 = vmatprep.subr.bf16.mxu0 0
    %114 = vmatpush2.bf16.msra.mxu0 0
    %115 = vmatprep.subr.bf16.mxu0 0
    %116 = vmatpush2.bf16.msra.mxu0 0
    %117 = vmatprep.subr.bf16.mxu0 0
    %118 = vmatpush2.bf16.msra.mxu0 0
    %119 = vmatprep.subr.bf16.mxu0 0
    %120 = vmatpush2.bf16.msra.mxu0 0
    %121 = vmatprep.subr.bf16.mxu0 0
    %122 = vmatpush2.bf16.msra.mxu0 0
    %123 = vmatprep.subr.bf16.mxu0 0
    %124 = vmatpush2.bf16.msra.mxu0 0
    %125 = vmatprep.subr.bf16.mxu0 0
    %126 = vmatpush2.bf16.msra.mxu0 0
    %127 = vmatprep.mubr.bf16.mxu0 0
    %128 = vmatmul.mubr.bf16.gmra.mxu0 %v72
    %v129 = vpop.f32.mrf.mxu0
    %v130 = vadd.f32 %v56, %v129
    %v131 = vpop.f32.mrf.mxu0
    %v132 = vpop.f32.mrf.mxu0
    %v133 = vadd.f32 %v56, %v132
    %v134 = vpop.f32.mrf.mxu0
    %135 = vmatprep.mubr.bf16.mxu0 0
    %136 = vmatmul.mubr.bf16.gmra.mxu0 %v75
    %v137 = vpop.f32.mrf.mxu0
    %v138 = vadd.f32 %v56, %v137
    %v139 = vpop.f32.mrf.mxu0
    %v140 = vpop.f32.mrf.mxu0
    %v141 = vadd.f32 %v56, %v140
    %v142 = vpop.f32.mrf.mxu0
    %143 = vmatprep.mubr.bf16.mxu0 0
    %144 = vmatmul.mubr.bf16.gmra.mxu0 %v78
    %v145 = vpop.f32.mrf.mxu0
    %v146 = vadd.f32 %v56, %v145
    %v147 = vpop.f32.mrf.mxu0
    %v148 = vpop.f32.mrf.mxu0
    %v149 = vadd.f32 %v56, %v148
    %v150 = vpop.f32.mrf.mxu0
    %151 = vmatprep.mubr.bf16.mxu0 0
    %152 = vmatmul.mubr.bf16.gmra.mxu0 %v81
    %v153 = vpop.f32.mrf.mxu0
    %v154 = vadd.f32 %v56, %v153
    %v155 = vpop.f32.mrf.mxu0
    %v156 = vpop.f32.mrf.mxu0
    %v157 = vadd.f32 %v56, %v156
    %v158 = vpop.f32.mrf.mxu0
    %159 = vmatprep.mubr.bf16.mxu0 0
    %160 = vmatmul.mubr.bf16.gmra.mxu0 %v84
    %v161 = vpop.f32.mrf.mxu0
    %v162 = vadd.f32 %v56, %v161
    %v163 = vpop.f32.mrf.mxu0
    %v164 = vpop.f32.mrf.mxu0
    %v165 = vadd.f32 %v56, %v164
    %v166 = vpop.f32.mrf.mxu0
    %167 = vmatprep.mubr.bf16.mxu0 0
    %168 = vmatmul.mubr.bf16.gmra.mxu0 %v87
    %v169 = vpop.f32.mrf.mxu0
    %v170 = vadd.f32 %v56, %v169
    %v171 = vpop.f32.mrf.mxu0
    %v172 = vpop.f32.mrf.mxu0
    %v173 = vadd.f32 %v56, %v172
    %v174 = vpop.f32.mrf.mxu0
    %175 = vmatprep.mubr.bf16.mxu0 0
    %176 = vmatmul.mubr.bf16.gmra.mxu0 %v90
    %v177 = vpop.f32.mrf.mxu0
    %v178 = vadd.f32 %v56, %v177
    %v179 = vpop.f32.mrf.mxu0
    %v180 = vpop.f32.mrf.mxu0
    %v181 = vadd.f32 %v56, %v180
    %v182 = vpop.f32.mrf.mxu0
    %183 = vmatprep.mubr.bf16.mxu0 0
    %184 = vmatmul.mubr.bf16.gmra.mxu0 %v93
    %v185 = vpop.f32.mrf.mxu0
    %v186 = vadd.f32 %v56, %v185
    %v187 = vpop.f32.mrf.mxu0
    %v188 = vpop.f32.mrf.mxu0
    %v189 = vadd.f32 %v56, %v188
    %v190 = vpop.f32.mrf.mxu0
    %191 = vdwg.mxu0
    %v192 = vmax.f32 %v130, 0.0
    %v193 = vmax.f32 %v133, 0.0
    %v194 = vmax.f32 %v138, 0.0
    %v195 = vmax.f32 %v141, 0.0
    %v196 = vmax.f32 %v146, 0.0
    %v197 = vmax.f32 %v149, 0.0
    %v198 = vmax.f32 %v154, 0.0
    %v199 = vmax.f32 %v157, 0.0
    %v200 = vmax.f32 %v162, 0.0
    %v201 = vmax.f32 %v165, 0.0
    %v202 = vmax.f32 %v170, 0.0
    %v203 = vmax.f32 %v173, 0.0
    %v204 = vmax.f32 %v178, 0.0
    %v205 = vmax.f32 %v181, 0.0
    %v206 = vmax.f32 %v186, 0.0
    %v207 = vmax.f32 %v189, 0.0
    %v208 = vld [vmem:[%s3] sm:$0xff]
    %209 = vmatprep.subr.mxu0 0.0
    %210 = vmatpush1.xpose.msra.mxu0 %v207
    %211 = vmatprep.subr.mxu0 0.0
    %212 = vmatpush1.xpose.msra.mxu0 %v206
    %213 = vmatprep.subr.mxu0 0.0
    %214 = vmatpush1.xpose.msra.mxu0 %v205
    %215 = vmatprep.subr.mxu0 0.0
    %216 = vmatpush1.xpose.msra.mxu0 %v204
    %217 = vmatprep.subr.mxu0 0.0
    %218 = vmatpush1.xpose.msra.mxu0 %v203
    %219 = vmatprep.subr.mxu0 0.0
    %220 = vmatpush1.xpose.msra.mxu0 %v202
    %221 = vmatprep.subr.mxu0 0.0
    %222 = vmatpush1.xpose.msra.mxu0 %v201
    %223 = vmatprep.subr.mxu0 0.0
    %224 = vmatpush1.xpose.msra.mxu0 %v200
    %225 = vmatprep.subr.mxu0 0.0
    %226 = vmatpush1.xpose.msra.mxu0 %v199
    %227 = vmatprep.subr.mxu0 0.0
    %228 = vmatpush1.xpose.msra.mxu0 %v198
    %229 = vmatprep.subr.mxu0 0.0
    %230 = vmatpush1.xpose.msra.mxu0 %v197
    %231 = vmatprep.subr.mxu0 0.0
    %232 = vmatpush1.xpose.msra.mxu0 %v196
    %233 = vmatprep.subr.mxu0 0.0
    %234 = vmatpush1.xpose.msra.mxu0 %v195
    %235 = vmatprep.subr.mxu0 0.0
    %236 = vmatpush1.xpose.msra.mxu0 %v194
    %237 = vmatprep.subr.mxu0 0.0
    %238 = vmatpush1.xpose.msra.mxu0 %v193
    %239 = vmatprep.subr.mxu0 0.0
    %240 = vmatpush1.xpose.msra.mxu0 %v192
    %241 = vmatprep.subr.mxu0 0.0
    %242 = vmatpush2.xpose.msra.mxu0 0.0
    %243 = vmatprep.subr.mxu0 0.0
    %244 = vmatpush2.xpose.msra.mxu0 0.0
    %245 = vmatprep.subr.mxu0 0.0
    %246 = vmatpush2.xpose.msra.mxu0 0.0
    %247 = vmatprep.subr.mxu0 0.0
    %248 = vmatpush2.xpose.msra.mxu0 0.0
    %249 = vmatprep.subr.mxu0 0.0
    %250 = vmatpush2.xpose.msra.mxu0 0.0
    %251 = vmatprep.subr.mxu0 0.0
    %252 = vmatpush2.xpose.msra.mxu0 0.0
    %253 = vmatprep.subr.mxu0 0.0
    %254 = vmatpush2.xpose.msra.mxu0 0.0
    %255 = vmatprep.subr.mxu0 0.0
    %256 = vmatpush2.xpose.msra.mxu0 0.0
    %257 = vmatprep.subr.mxu0 0.0
    %258 = vmatpush2.xpose.msra.mxu0 0.0
    %259 = vmatprep.subr.mxu0 0.0
    %260 = vmatpush2.xpose.msra.mxu0 0.0
    %261 = vmatprep.subr.mxu0 0.0
    %262 = vmatpush2.xpose.msra.mxu0 0.0
    %263 = vmatprep.subr.mxu0 0.0
    %264 = vmatpush2.xpose.msra.mxu0 0.0
    %265 = vmatprep.subr.mxu0 0.0
    %266 = vmatpush2.xpose.msra.mxu0 0.0
    %267 = vmatprep.subr.mxu0 0.0
    %268 = vmatpush2.xpose.msra.mxu0 0.0
    %269 = vmatprep.subr.mxu0 0.0
    %270 = vmatpush2.xpose.msra.mxu0 0.0
    %271 = vmatprep.subr.mxu0 0.0
    %272 = vmatpush2.xpose.msra.mxu0 0.0
    %273 = vmatprep.mubr.f32.mxu0 0.0
    %274 = vmatmul.mubr.f32.gmra.mxu0 %v208
    %v275 = vpop.f32.mrf.mxu0
    %v276 = vadd.f32 0.0, %v275
    %v277 = vpop.f32.mrf.mxu0
    %278 = vdwg.mxu0
    %s279 = sld [smem:[#allocation2]]
    %v280 = vstv %s279
    %v281 = vadd.f32 %v276, %v280
    %vm282 = vcmp.gt.f32.partialorder %v281, 20.0
    %v283 = vmin.f32 %v281, 20.0
    %v284 = vmul.f32 %v283, 1.442695
    %v285 = vpow.pop %v284
    %v286 = vadd.f32 %v285, 1.0
    %v287 = vlog2.pop %v286
    %v288 = vmul.f32 %v287, 0.6931472
    %v289 = vmul.f32 -0.5, %v285
    %v290 = vadd.f32 %v289, 1.0
    %v291 = vmul.f32 %v290, %v285
    %v292 = vand.u32 2147483647, %v285
    %vm293 = vcmp.lt.f32.partialorder %v292, 0.0004427343
    %v294 = vsel %vm293, %v291, %v288
    %v295 = vsel %vm282, %v281, %v294
    %296 = vst [vmem:[#allocation3] sm:$0x1] %v295
    // Predicated region
    $region22: #{tpu_custom_call.1} parent=1 // pred_check
      _
    $region23: #{tpu_custom_call.1} parent=1 // pred_check_branch
      %298 = sbr.rel (0) target = $region25
    $region24: #{tpu_custom_call.1} parent=1 // pred_region
      %s300 = ssub.s32 16, 16
      %301 = vsyncadd [#allocation4], %s300
      %s303 = sshll.u32 [#allocation3], 4
      %s304 = int_to_ptr.vmem [resolvable:$true] %s303
      %306 = dma.vmem_to_hbm [thread:$0]  %s304, 16, %s5, [#allocation4]
    $region25: #{tpu_custom_call.1} parent=1 // pred_fallthru
      _
    // Predicated region
    $region26: #{tpu_custom_call.1} parent=1 // pred_check
      _
    $region27: #{tpu_custom_call.1} parent=1 // pred_check_branch
      %308 = sbr.rel (0) target = $region29
    $region28: #{tpu_custom_call.1} parent=1 // pred_region
      %309 = dma.done [#allocation4], 16
    $region29: #{tpu_custom_call.1} parent=1 // pred_fallthru
      _
    %310 = vsyncpa [#allocation4], 1

</llo_original>
